<compile_context>
chip_gen: v6e
topology: v6e:2x2x1
jax: 0.10.0
libtpu: 0.0.40
codegen_flags: <defaults>
</compile_context>

<pallas_src>
import functools

import jax
import jax.numpy as jnp
from jax import lax
from jax.experimental import pallas as pl
from jax.experimental.pallas import tpu as pltpu


def _round_up(x, m):
    return (x + m - 1) // m * m


def _atan_f32(x):
    """Cephes-style float32 atan from VPU/EUP-friendly ops (max err ~1e-7).

    Mosaic has no math.atan lowering, so expand the polynomial by hand; the
    range-reduction divides go through the EUP reciprocal.
    """
    sign = jnp.where(x < 0.0, jnp.float32(-1.0), jnp.float32(1.0))
    ax = jnp.abs(x)

    t3p8 = jnp.float32(2.414213562373095)    # tan(3*pi/8)
    tp8 = jnp.float32(0.4142135623730951)    # tan(pi/8)

    big = ax > t3p8
    mid = jnp.logical_and(jnp.logical_not(big), ax > tp8)

    safe_ax = jnp.where(ax == 0.0, jnp.float32(1.0), ax)
    x_big = -pl.reciprocal(safe_ax, approx=False)
    x_mid = (ax - 1.0) * pl.reciprocal(ax + 1.0, approx=False)
    xr = jnp.where(big, x_big, jnp.where(mid, x_mid, ax))
    y0 = jnp.where(big, jnp.float32(jnp.pi / 2),
                   jnp.where(mid, jnp.float32(jnp.pi / 4), jnp.float32(0.0)))

    z = xr * xr
    p = ((jnp.float32(8.05374449538e-2) * z - jnp.float32(1.38776856032e-1)) * z
         + jnp.float32(1.99777106478e-1)) * z - jnp.float32(3.33329491539e-1)
    y = y0 + p * z * xr + xr
    return sign * y


def _ori_loss_kernel(bl_blk_ref, br_blk_ref, bl_off_ref, br_off_ref,   # SMEM
                     bl_feat_ref, br_feat_ref, coords_ref, gm_ref,     # VMEM in
                     num_ref, den_ref,                                 # out
                     acc_bl_ref, acc_br_ref,                           # scratch
                     *, m_actual):
    b = pl.program_id(0)
    m = pl.program_id(1)
    tile = bl_feat_ref.shape[2]
    m_pad = acc_bl_ref.shape[1]

    @pl.when(m == 0)
    def _init():
        acc_bl_ref[...] = jnp.zeros_like(acc_bl_ref)
        acc_br_ref[...] = jnp.zeros_like(acc_br_ref)

    # ---- exact gather of the 2 regression channels at the tagged lane ------
    # The fetched tile is the one containing tag m (data-dependent index_map);
    # select the single lane and reduce.  Exact for f32 and bf16 inputs.
    lane = lax.broadcasted_iota(jnp.int32, (1, tile), 1)
    fbl = bl_feat_ref[0].astype(jnp.float32)                   # (2, tile)
    fbr = br_feat_ref[0].astype(jnp.float32)
    g_bl = jnp.sum(jnp.where(lane == bl_off_ref[b, m], fbl, 0.0),
                   axis=-1, keepdims=True)                     # (2, 1)
    g_br = jnp.sum(jnp.where(lane == br_off_ref[b, m], fbr, 0.0),
                   axis=-1, keepdims=True)

    # scatter into the lane-major per-batch accumulator at lane m
    mlane = lax.broadcasted_iota(jnp.int32, (1, m_pad), 1)
    oh_m = (mlane == m).astype(jnp.float32)                    # (1, m_pad)
    acc_bl_ref[...] += g_bl * oh_m
    acc_br_ref[...] += g_br * oh_m

    # ---- finalize once per batch, on the last tag ---------------------------
    @pl.when(m == pl.num_programs(1) - 1)
    def _finalize():
        coords = coords_ref[0]                                 # (4, m_pad)
        gbl = acc_bl_ref[...]                                  # (2, m_pad)
        gbr = acc_br_ref[...]
        bl_xs = coords[0:1, :] + gbl[0:1, :]
        bl_ys = coords[1:2, :] + gbl[1:2, :]
        br_xs = coords[2:3, :] + gbr[0:1, :]
        br_ys = coords[3:4, :] + gbr[1:2, :]

        # NOTE: matches the PyTorch reference — a degenerate pair with
        # br_xs == bl_xs yields inf/nan exactly like torch.atan(x / 0).
        slope = -(br_ys - bl_ys) * pl.reciprocal(br_xs - bl_xs, approx=False)
        ori_pr = _atan_f32(slope)                              # (1, m_pad)

        gm = gm_ref[0]                                         # (2, m_pad)
        gt = gm[0:1, :]
        msk = gm[1:2, :]
        d = ori_pr * msk - gt * msk
        ad = jnp.abs(d)
        elem = jnp.where(ad < 1.0, 0.5 * ad * ad, ad - 0.5)
        # zero the lanes we padded M out to a full vreg with (they can be NaN)
        elem = jnp.where(mlane < m_actual, elem, 0.0)

        # lane-dense stores of the per-batch partial sums (no masked 1-lane vst)
        num_ref[...] = jnp.full((1, 1, 128), jnp.sum(elem), dtype=jnp.float32)
        den_ref[...] = jnp.full((1, 1, 128), jnp.sum(msk), dtype=jnp.float32)


def ori_reg_loss(bl_reg, br_reg, bl_tag, br_tag, ori_reg_gt, mask, *,
                 hw_tile=512):
    """JAX/Pallas equivalent of OriRegLoss.forward.  Returns a scalar.

    hw_tile: per-tag fetch granularity along the flattened spatial axis
    (multiple of 128).  256-1024 works well on v5e/v6e/v7x — resident VMEM is
    only a few KB per step on every generation, and smaller tiles mean less
    HBM traffic per gathered tag.
    """
    B, C, H, W = bl_reg.shape
    assert C == 2, "regression maps must have 2 channels (dx, dy)"
    HW = H * W
    M = bl_tag.shape[1]
    M_pad = _round_up(M, 128)

    tile = _round_up(min(hw_tile, _round_up(HW, 128)), 128)
    hw_pad = _round_up(HW, tile)
    n_blk = hw_pad // tile

    bl_feat = bl_reg.reshape(B, C, HW)           # keep native dtype (f32/bf16)
    br_feat = br_reg.reshape(B, C, HW)
    if hw_pad != HW:
        pad = ((0, 0), (0, 0), (0, hw_pad - HW))
        bl_feat = jnp.pad(bl_feat, pad)          # padded cols are never gathered
        br_feat = jnp.pad(br_feat, pad)

    # ---- tiny (B, M) prologue in plain JAX ----------------------------------
    bl_t = bl_tag.astype(jnp.int32)
    br_t = br_tag.astype(jnp.int32)

    # data-dependent fetch indices (tile index + in-tile lane) for SMEM prefetch
    bl_c = jnp.clip(bl_t, 0, HW - 1)
    br_c = jnp.clip(br_t, 0, HW - 1)
    bl_blk = bl_c // tile
    br_blk = br_c // tile
    bl_off = bl_c % tile
    br_off = br_c % tile

    # exact int32 tag -> (x, y) decode (torch: tag % (W*H) % W, (tag%(W*H))//W)
    t_bl = bl_t % HW
    t_br = br_t % HW

    # sort tags by tile index so consecutive grid steps reuse the fetched tile
    # (Pallas elides the DMA when the block index is unchanged); the loss is a
    # permutation-invariant sum, so this does not change the result.
    order = jnp.argsort(bl_blk * n_blk + br_blk, axis=1)
    perm = lambda a: jnp.take_along_axis(a, order, axis=1)
    bl_blk, br_blk = perm(bl_blk), perm(br_blk)
    bl_off, br_off = perm(bl_off), perm(br_off)
    t_bl, t_br = perm(t_bl), perm(t_br)
    ori_s = perm(ori_reg_gt.astype(jnp.float32))
    mask_s = perm(mask.astype(jnp.float32))

    coords = jnp.stack([(t_bl % W).astype(jnp.float32),
                        (t_bl // W).astype(jnp.float32),
                        (t_br % W).astype(jnp.float32),
                        (t_br // W).astype(jnp.float32)], axis=1)   # (B, 4, M)
    gm = jnp.stack([ori_s, mask_s], axis=1)                         # (B, 2, M)
    if M_pad != M:
        coords = jnp.pad(coords, ((0, 0), (0, 0), (0, M_pad - M)))
        gm = jnp.pad(gm, ((0, 0), (0, 0), (0, M_pad - M)))

    kernel = functools.partial(_ori_loss_kernel, m_actual=M)

    # data-dependent feature tile fetch driven by the scalar-prefetched tags
    def bl_feat_map(b, m, blb, brb, blo, bro):
        return (b, 0, blb[b, m])

    def br_feat_map(b, m, blb, brb, blo, bro):
        return (b, 0, brb[b, m])

    def batch_map(b, m, blb, brb, blo, bro):
        return (b, 0, 0)

    feat_bl_spec = pl.BlockSpec((1, 2, tile), bl_feat_map)
    feat_br_spec = pl.BlockSpec((1, 2, tile), br_feat_map)
    coords_spec = pl.BlockSpec((1, 4, M_pad), batch_map)
    gm_spec = pl.BlockSpec((1, 2, M_pad), batch_map)
    out_spec = pl.BlockSpec((1, 1, 128), batch_map)

    num_out, den_out = pl.pallas_call(
        kernel,
        out_shape=(jax.ShapeDtypeStruct((B, 1, 128), jnp.float32),
                   jax.ShapeDtypeStruct((B, 1, 128), jnp.float32)),
        grid_spec=pltpu.PrefetchScalarGridSpec(
            num_scalar_prefetch=4,
            grid=(B, M),
            in_specs=[feat_bl_spec, feat_br_spec, coords_spec, gm_spec],
            out_specs=(out_spec, out_spec),
            scratch_shapes=[pltpu.VMEM((2, M_pad), jnp.float32),
                            pltpu.VMEM((2, M_pad), jnp.float32)]),
        compiler_params=pltpu.CompilerParams(
            dimension_semantics=("parallel", "arbitrary")),
    )(bl_blk, br_blk, bl_off, br_off, bl_feat, br_feat, coords, gm)

    num = jnp.sum(num_out[:, 0, 0])
    den = jnp.sum(den_out[:, 0, 0]) + jnp.float32(1e-4)
    return num / den


def _reference_loss(bl_reg, br_reg, bl_tag, br_tag, ori_reg_gt, mask):
    """Pure-JAX reference mirroring the PyTorch code (for self-check)."""
    B, C, H, W = bl_reg.shape
    HW = H * W
    feat_bl = jnp.transpose(bl_reg.reshape(B, C, HW), (0, 2, 1))  # (B, HW, C)
    feat_br = jnp.transpose(br_reg.reshape(B, C, HW), (0, 2, 1))
    bl_g = jnp.take_along_axis(feat_bl, bl_tag[..., None], axis=1)  # (B, M, 2)
    br_g = jnp.take_along_axis(feat_br, br_tag[..., None], axis=1)

    bl_x = ((bl_tag % HW) % W).astype(jnp.float32)
    bl_y = ((bl_tag % HW) // W).astype(jnp.float32)
    br_x = ((br_tag % HW) % W).astype(jnp.float32)
    br_y = ((br_tag % HW) // W).astype(jnp.float32)

    bl_xs = bl_x + bl_g[..., 0]
    bl_ys = bl_y + bl_g[..., 1]
    br_xs = br_x + br_g[..., 0]
    br_ys = br_y + br_g[..., 1]

    ori_pr = jnp.arctan(-(br_ys - bl_ys) / (br_xs - bl_xs))
    m = mask.astype(jnp.float32)
    d = ori_pr * m - ori_reg_gt * m
    ad = jnp.abs(d)
    el = jnp.where(ad < 1.0, 0.5 * ad * ad, ad - 0.5)
    return jnp.sum(el) / (jnp.sum(m) + 1e-4)


if __name__ == "__main__":
    # non-power-of-two W exercises the exact x/y decode; hw_tile=128 gives
    # 3 spatial tiles so the data-dependent block fetch is actually exercised.
    B, C, H, W, M = 2, 2, 16, 24, 8
    key = jax.random.PRNGKey(0)
    k1, k2, k3, k4, k5, k6 = jax.random.split(key, 6)

    bl_reg = jax.random.normal(k1, (B, C, H, W), jnp.float32) * 0.5
    br_reg = jax.random.normal(k2, (B, C, H, W), jnp.float32) * 0.5
    bl_tag = jax.random.randint(k3, (B, M), 0, H * W, jnp.int32)
    br_tag = jax.random.randint(k4, (B, M), 0, H * W, jnp.int32)
    # avoid exactly-coincident corner pairs (they give nan in torch too, which
    # would just make this self-check vacuous)
    br_tag = jnp.where(br_tag == bl_tag, (br_tag + 1) % (H * W), br_tag)
    ori_gt = jax.random.uniform(k5, (B, M), jnp.float32, -1.0, 1.0)
    mask = (jax.random.uniform(k6, (B, M)) > 0.3).astype(jnp.float32)

    loss = ori_reg_loss(bl_reg, br_reg, bl_tag, br_tag, ori_gt, mask,
                        hw_tile=128)
    loss = jax.block_until_ready(loss)

    ref = jax.block_until_ready(
        _reference_loss(bl_reg, br_reg, bl_tag, br_tag, ori_gt, mask))
    assert jnp.isfinite(loss), f"non-finite loss: {loss}"
    assert abs(float(loss) - float(ref)) < 1e-3, (float(loss), float(ref))

    print("KERNEL_OK")
</pallas_src>

<mosaic_0001>
module attributes {stable_mosaic.version = 11 : i64} {
  func.func @_ori_loss_kernel(%arg0: i32, %arg1: i32, %arg2: memref<2x8xi32, #tpu.memory_space<smem>>, %arg3: memref<2x8xi32, #tpu.memory_space<smem>>, %arg4: memref<2x8xi32, #tpu.memory_space<smem>>, %arg5: memref<2x8xi32, #tpu.memory_space<smem>>, %arg6: memref<1x2x128xf32, #tpu.memory_space<vmem>>, %arg7: memref<1x2x128xf32, #tpu.memory_space<vmem>>, %arg8: memref<1x4x128xf32, #tpu.memory_space<vmem>>, %arg9: memref<1x2x128xf32, #tpu.memory_space<vmem>>, %arg10: memref<1x1x128xf32, #tpu.memory_space<vmem>>, %arg11: memref<1x1x128xf32, #tpu.memory_space<vmem>>, %arg12: memref<2x128xf32, #tpu.memory_space<vmem>>, %arg13: memref<2x128xf32, #tpu.memory_space<vmem>>) attributes {dimension_semantics = [#tpu.dimension_semantics<parallel>, #tpu.dimension_semantics<arbitrary>], iteration_bounds = array<i64: 2, 8>, scalar_prefetch = 4 : i64, scratch_operands = 2 : i64, tpu.core_type = #tpu.core_type<tc>, window_params = [{transform_indices = @transform_0, window_bounds = array<i64: 1, 2, 128>}, {transform_indices = @transform_1, window_bounds = array<i64: 1, 2, 128>}, {transform_indices = @transform_2, window_bounds = array<i64: 1, 4, 128>}, {transform_indices = @transform_3, window_bounds = array<i64: 1, 2, 128>}, {transform_indices = @transform_4, window_bounds = array<i64: 1, 1, 128>}, {transform_indices = @transform_5, window_bounds = array<i64: 1, 1, 128>}]} {
    %c0_i32 = arith.constant 0 : i32
    %0 = arith.cmpi eq, %arg1, %c0_i32 : i32
    %1 = arith.extui %0 : i1 to i32
    %c0_i32_0 = arith.constant 0 : i32
    %2 = arith.cmpi ne, %1, %c0_i32_0 : i32
    scf.if %2 {
      %cst_18 = arith.constant 0.000000e+00 : f32
      %50 = vector.broadcast %cst_18 : f32 to vector<2x128xf32>
      %c0_19 = arith.constant 0 : index
      %c0_20 = arith.constant 0 : index
      %51 = vector.load %arg12[%c0_19, %c0_20] : memref<2x128xf32, #tpu.memory_space<vmem>>, vector<2x128xf32>
      tpu.vector_store %arg12[%c0_19, %c0_20], %50 {strides = array<i32>} : memref<2x128xf32, #tpu.memory_space<vmem>>, vector<2x128xf32>,
      %cst_21 = arith.constant 0.000000e+00 : f32
      %52 = vector.broadcast %cst_21 : f32 to vector<2x128xf32>
      %c0_22 = arith.constant 0 : index
      %c0_23 = arith.constant 0 : index
      %53 = vector.load %arg13[%c0_22, %c0_23] : memref<2x128xf32, #tpu.memory_space<vmem>>, vector<2x128xf32>
      tpu.vector_store %arg13[%c0_22, %c0_23], %52 {strides = array<i32>} : memref<2x128xf32, #tpu.memory_space<vmem>>, vector<2x128xf32>,
    } else {
    }
    %3 = tpu.iota {dimensions = array<i32: 1>} : vector<1x128xi32>
    %c0 = arith.constant 0 : index
    %c0_1 = arith.constant 0 : index
    %c0_2 = arith.constant 0 : index
    %4 = vector.load %arg6[%c0, %c0_1, %c0_2] : memref<1x2x128xf32, #tpu.memory_space<vmem>>, vector<1x2x128xf32>
    %5 = vector.shape_cast %4 : vector<1x2x128xf32> to vector<2x128xf32>
    %c0_3 = arith.constant 0 : index
    %c0_4 = arith.constant 0 : index
    %c0_5 = arith.constant 0 : index
    %6 = vector.load %arg7[%c0_3, %c0_4, %c0_5] : memref<1x2x128xf32, #tpu.memory_space<vmem>>, vector<1x2x128xf32>
    %7 = vector.shape_cast %6 : vector<1x2x128xf32> to vector<2x128xf32>
    %8 = arith.index_cast %arg0 : i32 to index
    %9 = arith.index_cast %arg1 : i32 to index
    %10 = memref.load %arg4[%8, %9] : memref<2x8xi32, #tpu.memory_space<smem>>
    %11 = vector.broadcast %10 : i32 to vector<1x128xi32>
    %12 = arith.cmpi eq, %3, %11 : vector<1x128xi32>
    %cst = arith.constant 0.000000e+00 : f32
    %13 = vector.shape_cast %12 : vector<1x128xi1> to vector<1x128xi1>
    %14 = vector.broadcast %13 : vector<1x128xi1> to vector<2x128xi1>
    %15 = vector.broadcast %cst : f32 to vector<2x128xf32>
    %16 = arith.select %14, %5, %15 : vector<2x128xi1>, vector<2x128xf32>
    %cst_6 = arith.constant dense<0.000000e+00> : vector<2xf32>
    %17 = vector.multi_reduction <add>, %16, %cst_6 [1] : vector<2x128xf32> to vector<2xf32>
    %18 = vector.shape_cast %17 : vector<2xf32> to vector<2x1xf32>
    %19 = arith.index_cast %arg0 : i32 to index
    %20 = arith.index_cast %arg1 : i32 to index
    %21 = memref.load %arg5[%19, %20] : memref<2x8xi32, #tpu.memory_space<smem>>
    %22 = vector.broadcast %21 : i32 to vector<1x128xi32>
    %23 = arith.cmpi eq, %3, %22 : vector<1x128xi32>
    %cst_7 = arith.constant 0.000000e+00 : f32
    %24 = vector.shape_cast %23 : vector<1x128xi1> to vector<1x128xi1>
    %25 = vector.broadcast %24 : vector<1x128xi1> to vector<2x128xi1>
    %26 = vector.broadcast %cst_7 : f32 to vector<2x128xf32>
    %27 = arith.select %25, %7, %26 : vector<2x128xi1>, vector<2x128xf32>
    %cst_8 = arith.constant dense<0.000000e+00> : vector<2xf32>
    %28 = vector.multi_reduction <add>, %27, %cst_8 [1] : vector<2x128xf32> to vector<2xf32>
    %29 = vector.shape_cast %28 : vector<2xf32> to vector<2x1xf32>
    %30 = tpu.iota {dimensions = array<i32: 1>} : vector<1x128xi32>
    %31 = vector.broadcast %arg1 : i32 to vector<1x128xi32>
    %32 = arith.cmpi eq, %30, %31 : vector<1x128xi32>
    %33 = arith.extui %32 : vector<1x128xi1> to vector<1x128xi32>
    %34 = arith.sitofp %33 : vector<1x128xi32> to vector<1x128xf32>
    %c0_9 = arith.constant 0 : index
    %c0_10 = arith.constant 0 : index
    %35 = vector.load %arg12[%c0_9, %c0_10] : memref<2x128xf32, #tpu.memory_space<vmem>>, vector<2x128xf32>
    %36 = vector.broadcast %18 : vector<2x1xf32> to vector<2x128xf32>
    %37 = vector.broadcast %34 : vector<1x128xf32> to vector<2x128xf32>
    %38 = arith.mulf %36, %37 : vector<2x128xf32>
    %39 = arith.addf %35, %38 : vector<2x128xf32>
    %c0_11 = arith.constant 0 : index
    %c0_12 = arith.constant 0 : index
    %40 = vector.load %arg12[%c0_11, %c0_12] : memref<2x128xf32, #tpu.memory_space<vmem>>, vector<2x128xf32>
    tpu.vector_store %arg12[%c0_11, %c0_12], %39 {strides = array<i32>} : memref<2x128xf32, #tpu.memory_space<vmem>>, vector<2x128xf32>,
    %c0_13 = arith.constant 0 : index
    %c0_14 = arith.constant 0 : index
    %41 = vector.load %arg13[%c0_13, %c0_14] : memref<2x128xf32, #tpu.memory_space<vmem>>, vector<2x128xf32>
    %42 = vector.broadcast %29 : vector<2x1xf32> to vector<2x128xf32>
    %43 = vector.broadcast %34 : vector<1x128xf32> to vector<2x128xf32>
    %44 = arith.mulf %42, %43 : vector<2x128xf32>
    %45 = arith.addf %41, %44 : vector<2x128xf32>
    %c0_15 = arith.constant 0 : index
    %c0_16 = arith.constant 0 : index
    %46 = vector.load %arg13[%c0_15, %c0_16] : memref<2x128xf32, #tpu.memory_space<vmem>>, vector<2x128xf32>
    tpu.vector_store %arg13[%c0_15, %c0_16], %45 {strides = array<i32>} : memref<2x128xf32, #tpu.memory_space<vmem>>, vector<2x128xf32>,
    %c7_i32 = arith.constant 7 : i32
    %47 = arith.cmpi eq, %arg1, %c7_i32 : i32
    %48 = arith.extui %47 : i1 to i32
    %c0_i32_17 = arith.constant 0 : i32
    %49 = arith.cmpi ne, %48, %c0_i32_17 : i32
    scf.if %49 {
      %c0_18 = arith.constant 0 : index
      %c0_19 = arith.constant 0 : index
      %c0_20 = arith.constant 0 : index
      %50 = vector.load %arg8[%c0_18, %c0_19, %c0_20] : memref<1x4x128xf32, #tpu.memory_space<vmem>>, vector<1x4x128xf32>
      %51 = vector.shape_cast %50 : vector<1x4x128xf32> to vector<4x128xf32>
      %c0_21 = arith.constant 0 : index
      %c0_22 = arith.constant 0 : index
      %52 = vector.load %arg12[%c0_21, %c0_22] : memref<2x128xf32, #tpu.memory_space<vmem>>, vector<2x128xf32>
      %c0_23 = arith.constant 0 : index
      %c0_24 = arith.constant 0 : index
      %53 = vector.load %arg13[%c0_23, %c0_24] : memref<2x128xf32, #tpu.memory_space<vmem>>, vector<2x128xf32>
      %54 = vector.extract_strided_slice %51 {offsets = [0, 0], sizes = [1, 128], strides = [1, 1]} : vector<4x128xf32> to vector<1x128xf32>
      %55 = vector.extract_strided_slice %52 {offsets = [0, 0], sizes = [1, 128], strides = [1, 1]} : vector<2x128xf32> to vector<1x128xf32>
      %56 = arith.addf %54, %55 : vector<1x128xf32>
      %57 = vector.extract_strided_slice %51 {offsets = [1, 0], sizes = [1, 128], strides = [1, 1]} : vector<4x128xf32> to vector<1x128xf32>
      %58 = vector.extract_strided_slice %52 {offsets = [1, 0], sizes = [1, 128], strides = [1, 1]} : vector<2x128xf32> to vector<1x128xf32>
      %59 = arith.addf %57, %58 : vector<1x128xf32>
      %60 = vector.extract_strided_slice %51 {offsets = [2, 0], sizes = [1, 128], strides = [1, 1]} : vector<4x128xf32> to vector<1x128xf32>
      %61 = vector.extract_strided_slice %53 {offsets = [0, 0], sizes = [1, 128], strides = [1, 1]} : vector<2x128xf32> to vector<1x128xf32>
      %62 = arith.addf %60, %61 : vector<1x128xf32>
      %63 = vector.extract_strided_slice %51 {offsets = [3, 0], sizes = [1, 128], strides = [1, 1]} : vector<4x128xf32> to vector<1x128xf32>
      %64 = vector.extract_strided_slice %53 {offsets = [1, 0], sizes = [1, 128], strides = [1, 1]} : vector<2x128xf32> to vector<1x128xf32>
      %65 = arith.addf %63, %64 : vector<1x128xf32>
      %66 = arith.subf %65, %59 : vector<1x128xf32>
      %cst_25 = arith.constant 0.000000e+00 : f32
      %67 = vector.broadcast %cst_25 : f32 to vector<1x128xf32>
      %68 = arith.subf %67, %66 : vector<1x128xf32>
      %69 = arith.subf %62, %56 : vector<1x128xf32>
      %70 = tpu.reciprocal %69 : vector<1x128xf32> -> vector<1x128xf32>
      %71 = arith.mulf %68, %70 : vector<1x128xf32>
      %cst_26 = arith.constant 0.000000e+00 : f32
      %72 = vector.broadcast %cst_26 : f32 to vector<1x128xf32>
      %73 = arith.cmpf olt, %71, %72 : vector<1x128xf32>
      %cst_27 = arith.constant -1.000000e+00 : f32
      %cst_28 = arith.constant 1.000000e+00 : f32
      %74 = vector.broadcast %cst_27 : f32 to vector<1x128xf32>
      %75 = vector.broadcast %cst_28 : f32 to vector<1x128xf32>
      %76 = arith.select %73, %74, %75 : vector<1x128xi1>, vector<1x128xf32>
      %77 = math.absf %71 : vector<1x128xf32>
      %cst_29 = arith.constant 2.41421366 : f32
      %78 = vector.broadcast %cst_29 : f32 to vector<1x128xf32>
      %79 = arith.cmpf ogt, %77, %78 : vector<1x128xf32>
      %cst_30 = arith.constant dense<true> : vector<1x128xi1>
      %80 = arith.xori %79, %cst_30 : vector<1x128xi1>
      %cst_31 = arith.constant 0.414213568 : f32
      %81 = vector.broadcast %cst_31 : f32 to vector<1x128xf32>
      %82 = arith.cmpf ogt, %77, %81 : vector<1x128xf32>
      %83 = arith.andi %80, %82 : vector<1x128xi1>
      %cst_32 = arith.constant 0.000000e+00 : f32
      %84 = vector.broadcast %cst_32 : f32 to vector<1x128xf32>
      %85 = arith.cmpf oeq, %77, %84 : vector<1x128xf32>
      %cst_33 = arith.constant 1.000000e+00 : f32
      %86 = vector.broadcast %cst_33 : f32 to vector<1x128xf32>
      %87 = arith.select %85, %86, %77 : vector<1x128xi1>, vector<1x128xf32>
      %88 = tpu.reciprocal %87 : vector<1x128xf32> -> vector<1x128xf32>
      %cst_34 = arith.constant 0.000000e+00 : f32
      %89 = vector.broadcast %cst_34 : f32 to vector<1x128xf32>
      %90 = arith.subf %89, %88 : vector<1x128xf32>
      %cst_35 = arith.constant 1.000000e+00 : f32
      %91 = vector.broadcast %cst_35 : f32 to vector<1x128xf32>
      %92 = arith.subf %77, %91 : vector<1x128xf32>
      %cst_36 = arith.constant 1.000000e+00 : f32
      %93 = vector.broadcast %cst_36 : f32 to vector<1x128xf32>
      %94 = arith.addf %77, %93 : vector<1x128xf32>
      %95 = tpu.reciprocal %94 : vector<1x128xf32> -> vector<1x128xf32>
      %96 = arith.mulf %92, %95 : vector<1x128xf32>
      %97 = arith.select %83, %96, %77 : vector<1x128xi1>, vector<1x128xf32>
      %98 = arith.select %79, %90, %97 : vector<1x128xi1>, vector<1x128xf32>
      %cst_37 = arith.constant 0.785398185 : f32
      %cst_38 = arith.constant 0.000000e+00 : f32
      %99 = vector.broadcast %cst_37 : f32 to vector<1x128xf32>
      %100 = vector.broadcast %cst_38 : f32 to vector<1x128xf32>
      %101 = arith.select %83, %99, %100 : vector<1x128xi1>, vector<1x128xf32>
      %cst_39 = arith.constant 1.57079637 : f32
      %102 = vector.broadcast %cst_39 : f32 to vector<1x128xf32>
      %103 = arith.select %79, %102, %101 : vector<1x128xi1>, vector<1x128xf32>
      %104 = arith.mulf %98, %98 : vector<1x128xf32>
      %cst_40 = arith.constant 0.0805374458 : f32
      %105 = vector.broadcast %cst_40 : f32 to vector<1x128xf32>
      %106 = arith.mulf %105, %104 : vector<1x128xf32>
      %cst_41 = arith.constant 0.138776854 : f32
      %107 = vector.broadcast %cst_41 : f32 to vector<1x128xf32>
      %108 = arith.subf %106, %107 : vector<1x128xf32>
      %109 = arith.mulf %108, %104 : vector<1x128xf32>
      %cst_42 = arith.constant 0.199777111 : f32
      %110 = vector.broadcast %cst_42 : f32 to vector<1x128xf32>
      %111 = arith.addf %109, %110 : vector<1x128xf32>
      %112 = arith.mulf %111, %104 : vector<1x128xf32>
      %cst_43 = arith.constant 0.333329499 : f32
      %113 = vector.broadcast %cst_43 : f32 to vector<1x128xf32>
      %114 = arith.subf %112, %113 : vector<1x128xf32>
      %115 = arith.mulf %114, %104 : vector<1x128xf32>
      %116 = arith.mulf %115, %98 : vector<1x128xf32>
      %117 = arith.addf %103, %116 : vector<1x128xf32>
      %118 = arith.addf %117, %98 : vector<1x128xf32>
      %119 = arith.mulf %76, %118 : vector<1x128xf32>
      %c0_44 = arith.constant 0 : index
      %c0_45 = arith.constant 0 : index
      %c0_46 = arith.constant 0 : index
      %120 = vector.load %arg9[%c0_44, %c0_45, %c0_46] : memref<1x2x128xf32, #tpu.memory_space<vmem>>, vector<1x2x128xf32>
      %121 = vector.shape_cast %120 : vector<1x2x128xf32> to vector<2x128xf32>
      %122 = vector.extract_strided_slice %121 {offsets = [0, 0], sizes = [1, 128], strides = [1, 1]} : vector<2x128xf32> to vector<1x128xf32>
      %123 = vector.extract_strided_slice %121 {offsets = [1, 0], sizes = [1, 128], strides = [1, 1]} : vector<2x128xf32> to vector<1x128xf32>
      %124 = arith.mulf %119, %123 : vector<1x128xf32>
      %125 = arith.mulf %122, %123 : vector<1x128xf32>
      %126 = arith.subf %124, %125 : vector<1x128xf32>
      %127 = math.absf %126 : vector<1x128xf32>
      %cst_47 = arith.constant 1.000000e+00 : f32
      %128 = vector.broadcast %cst_47 : f32 to vector<1x128xf32>
      %129 = arith.cmpf olt, %127, %128 : vector<1x128xf32>
      %cst_48 = arith.constant 5.000000e-01 : f32
      %130 = vector.broadcast %cst_48 : f32 to vector<1x128xf32>
      %131 = arith.mulf %130, %127 : vector<1x128xf32>
      %132 = arith.mulf %131, %127 : vector<1x128xf32>
      %cst_49 = arith.constant 5.000000e-01 : f32
      %133 = vector.broadcast %cst_49 : f32 to vector<1x128xf32>
      %134 = arith.subf %127, %133 : vector<1x128xf32>
      %135 = arith.select %129, %132, %134 : vector<1x128xi1>, vector<1x128xf32>
      %c8_i32 = arith.constant 8 : i32
      %136 = vector.broadcast %c8_i32 : i32 to vector<1x128xi32>
      %137 = arith.cmpi slt, %30, %136 : vector<1x128xi32>
      %cst_50 = arith.constant 0.000000e+00 : f32
      %138 = vector.broadcast %cst_50 : f32 to vector<1x128xf32>
      %139 = arith.select %137, %135, %138 : vector<1x128xi1>, vector<1x128xf32>
      %140 = vector.shape_cast %139 : vector<1x128xf32> to vector<1x1x128xf32>
      %cst_51 = arith.constant dense<0.000000e+00> : vector<1xf32>
      %141 = vector.multi_reduction <add>, %140, %cst_51 [1, 2] : vector<1x1x128xf32> to vector<1xf32>
      %142 = vector.shape_cast %141 : vector<1xf32> to vector<1x1x1xf32>
      %143 = vector.extract %142[0, 0, 0] : f32 from vector<1x1x1xf32>
      %144 = vector.broadcast %143 : f32 to vector<1x1x128xf32>
      %c0_52 = arith.constant 0 : index
      %c0_53 = arith.constant 0 : index
      %c0_54 = arith.constant 0 : index
      %145 = vector.load %arg10[%c0_52, %c0_53, %c0_54] : memref<1x1x128xf32, #tpu.memory_space<vmem>>, vector<1x1x128xf32>
      tpu.vector_store %arg10[%c0_52, %c0_53, %c0_54], %144 {strides = array<i32>} : memref<1x1x128xf32, #tpu.memory_space<vmem>>, vector<1x1x128xf32>,
      %146 = vector.shape_cast %123 : vector<1x128xf32> to vector<1x1x128xf32>
      %cst_55 = arith.constant dense<0.000000e+00> : vector<1xf32>
      %147 = vector.multi_reduction <add>, %146, %cst_55 [1, 2] : vector<1x1x128xf32> to vector<1xf32>
      %148 = vector.shape_cast %147 : vector<1xf32> to vector<1x1x1xf32>
      %149 = vector.extract %148[0, 0, 0] : f32 from vector<1x1x1xf32>
      %150 = vector.broadcast %149 : f32 to vector<1x1x128xf32>
      %c0_56 = arith.constant 0 : index
      %c0_57 = arith.constant 0 : index
      %c0_58 = arith.constant 0 : index
      %151 = vector.load %arg11[%c0_56, %c0_57, %c0_58] : memref<1x1x128xf32, #tpu.memory_space<vmem>>, vector<1x1x128xf32>
      tpu.vector_store %arg11[%c0_56, %c0_57, %c0_58], %150 {strides = array<i32>} : memref<1x1x128xf32, #tpu.memory_space<vmem>>, vector<1x1x128xf32>,
    } else {
    }
    return
  }
  func.func @transform_0(%arg0: i32, %arg1: i32, %arg2: memref<2x8xi32, #tpu.memory_space<smem>>, %arg3: memref<2x8xi32, #tpu.memory_space<smem>>, %arg4: memref<2x8xi32, #tpu.memory_space<smem>>, %arg5: memref<2x8xi32, #tpu.memory_space<smem>>) -> (i32, i32, i32) {
    %0 = arith.index_cast %arg0 : i32 to index
    %1 = arith.index_cast %arg1 : i32 to index
    %2 = memref.load %arg2[%0, %1] : memref<2x8xi32, #tpu.memory_space<smem>>
    %c0_i32 = arith.constant 0 : i32
    %c0_i32_0 = arith.constant 0 : i32
    return %arg0, %c0_i32, %2 : i32, i32, i32
  }
  func.func @transform_1(%arg0: i32, %arg1: i32, %arg2: memref<2x8xi32, #tpu.memory_space<smem>>, %arg3: memref<2x8xi32, #tpu.memory_space<smem>>, %arg4: memref<2x8xi32, #tpu.memory_space<smem>>, %arg5: memref<2x8xi32, #tpu.memory_space<smem>>) -> (i32, i32, i32) {
    %0 = arith.index_cast %arg0 : i32 to index
    %1 = arith.index_cast %arg1 : i32 to index
    %2 = memref.load %arg3[%0, %1] : memref<2x8xi32, #tpu.memory_space<smem>>
    %c0_i32 = arith.constant 0 : i32
    %c0_i32_0 = arith.constant 0 : i32
    return %arg0, %c0_i32, %2 : i32, i32, i32
  }
  func.func @transform_2(%arg0: i32, %arg1: i32, %arg2: memref<2x8xi32, #tpu.memory_space<smem>>, %arg3: memref<2x8xi32, #tpu.memory_space<smem>>, %arg4: memref<2x8xi32, #tpu.memory_space<smem>>, %arg5: memref<2x8xi32, #tpu.memory_space<smem>>) -> (i32, i32, i32) {
    %c0_i32 = arith.constant 0 : i32
    %c0_i32_0 = arith.constant 0 : i32
    %c0_i32_1 = arith.constant 0 : i32
    return %arg0, %c0_i32, %c0_i32_0 : i32, i32, i32
  }
  func.func @transform_3(%arg0: i32, %arg1: i32, %arg2: memref<2x8xi32, #tpu.memory_space<smem>>, %arg3: memref<2x8xi32, #tpu.memory_space<smem>>, %arg4: memref<2x8xi32, #tpu.memory_space<smem>>, %arg5: memref<2x8xi32, #tpu.memory_space<smem>>) -> (i32, i32, i32) {
    %c0_i32 = arith.constant 0 : i32
    %c0_i32_0 = arith.constant 0 : i32
    %c0_i32_1 = arith.constant 0 : i32
    return %arg0, %c0_i32, %c0_i32_0 : i32, i32, i32
  }
  func.func @transform_4(%arg0: i32, %arg1: i32, %arg2: memref<2x8xi32, #tpu.memory_space<smem>>, %arg3: memref<2x8xi32, #tpu.memory_space<smem>>, %arg4: memref<2x8xi32, #tpu.memory_space<smem>>, %arg5: memref<2x8xi32, #tpu.memory_space<smem>>) -> (i32, i32, i32) {
    %c0_i32 = arith.constant 0 : i32
    %c0_i32_0 = arith.constant 0 : i32
    %c0_i32_1 = arith.constant 0 : i32
    return %arg0, %c0_i32, %c0_i32_0 : i32, i32, i32
  }
  func.func @transform_5(%arg0: i32, %arg1: i32, %arg2: memref<2x8xi32, #tpu.memory_space<smem>>, %arg3: memref<2x8xi32, #tpu.memory_space<smem>>, %arg4: memref<2x8xi32, #tpu.memory_space<smem>>, %arg5: memref<2x8xi32, #tpu.memory_space<smem>>) -> (i32, i32, i32) {
    %c0_i32 = arith.constant 0 : i32
    %c0_i32_0 = arith.constant 0 : i32
    %c0_i32_1 = arith.constant 0 : i32
    return %arg0, %c0_i32, %c0_i32_0 : i32, i32, i32
  }
}

</mosaic_0001>

<llo_original>
// kernel: tpu_custom_call.1
$region0: #{tpu_custom_call.1}
  #allocation0 [shape = 'u32[]', space=smem, size = 0x4, offset = 0x4, fixed_abs, tag = 'smem constant byte address 0x4 - core index']
  #allocation1 [shape = 'u32[144,128]{1,0:T(1,128)}', space=vmem, size = 0x12000, scoped, tag = 'internal scratch']
  #allocation2 [shape = 'f32[2,128]{1,0:T(2,128)}', space=vmem, size = 0x400, scoped, tag = 'scratch operand']
  #allocation3 [shape = 'f32[2,128]{1,0:T(2,128)}', space=vmem, size = 0x400, scoped, tag = 'scratch operand']
  #allocation4 [shape = 's32[1]{0}', space=sflag, size = 0x4, scoped, tag = 'scoped memory for tpu_custom_call.1']
  #allocation5 [shape = 'u8[1024]{0}', space=smem, size = 0x400, scoped, tag = 'prefetched SMEM operand 0']
  #allocation6 [shape = 'u8[1024]{0}', space=smem, size = 0x400, scoped, tag = 'prefetched SMEM operand 1']
  #allocation7 [shape = 'u8[1024]{0}', space=smem, size = 0x400, scoped, tag = 'prefetched SMEM operand 2']
  #allocation8 [shape = 'u8[1024]{0}', space=smem, size = 0x400, scoped, tag = 'prefetched SMEM operand 3']
  %s0 = inlined_call_operand.hbm [shape: s32[2,8], index: 0, kind: input, shape index: {}]
  %s1 = inlined_call_operand.hbm [shape: s32[2,8], index: 1, kind: input, shape index: {}]
  %s2 = inlined_call_operand.hbm [shape: s32[2,8], index: 2, kind: input, shape index: {}]
  %s3 = inlined_call_operand.hbm [shape: s32[2,8], index: 3, kind: input, shape index: {}]
  %s4 = inlined_call_operand.hbm [shape: f32[2,2,384], index: 4, kind: input, shape index: {}]
  %s5 = inlined_call_operand.hbm [shape: f32[2,2,384], index: 5, kind: input, shape index: {}]
  %s6 = inlined_call_operand.vmem [shape: f32[2,4,128], index: 6, kind: input, shape index: {}]
  %s7 = inlined_call_operand.vmem [shape: f32[2,2,128], index: 7, kind: input, shape index: {}]
  %s8 = inlined_call_operand.hbm [shape: f32[2,1,128], index: 8, kind: output, shape index: {0}]
  %s9 = inlined_call_operand.hbm [shape: f32[2,1,128], index: 9, kind: output, shape index: {1}]
  %10 = xla_tuple %s8, %s9
  %s11 = sld [smem:[#allocation0]]
  $region73: #{tpu_custom_call.1} parent=0
    _
  %s13 = ssub.s32 1, %s11
  %s14 = scalar_select 0, %s13, %s11
  %16 = dma.hbm_to_smem %s0, 32, [#allocation5], [#allocation4]
  %18 = dma.hbm_to_smem %s1, 32, [#allocation6], [#allocation4]
  %20 = dma.hbm_to_smem %s2, 32, [#allocation7], [#allocation4]
  %22 = dma.hbm_to_smem %s3, 32, [#allocation8], [#allocation4]
  %23 = dma.done [#allocation4], 128
  %24 = sfence
  $region1: #{tpu_custom_call.1} parent=0
    #allocation9 [shape = 'u8[2048]{0}', space=vmem, size = 0x800, scoped, tag = 'input window, operand 4']
    #allocation10 [shape = 's32[2]{0}', space=sflag, size = 0x8, scoped, tag = 'scoped memory for tpu_custom_call.1']
    #allocation11 [shape = 's32[2]{0}', space=sflag, size = 0x8, scoped, tag = 'scoped memory for tpu_custom_call.1']
    #allocation12 [shape = 'u8[2048]{0}', space=vmem, size = 0x800, scoped, tag = 'input window, operand 5']
    #allocation13 [shape = 's32[2]{0}', space=sflag, size = 0x8, scoped, tag = 'scoped memory for tpu_custom_call.1']
    #allocation14 [shape = 'u8[1024]{0}', space=vmem, size = 0x400, scoped, tag = 'output window, operand 0']
    #allocation15 [shape = 'u8[1024]{0}', space=vmem, size = 0x400, scoped, tag = 'output window, operand 1']
    #allocation16 [shape = 's32[2]{0}', space=sflag, size = 0x8, scoped, tag = 'scoped memory for tpu_custom_call.1']
    %25 = vsyncpa [#allocation10], 0
    %s26 = scalar_lea.sflag [#allocation10], 1
    %27 = vsyncpa %s26, 0
    %28 = vsyncpa [#allocation13], 0
    %s29 = scalar_lea.sflag [#allocation13], 1
    %30 = vsyncpa %s29, 0
    %31 = vsyncpa [#allocation11], 0
    %s32 = scalar_lea.sflag [#allocation11], 1
    %33 = vsyncpa %s32, 0
    %34 = vsyncpa [#allocation16], 0
    %s35 = scalar_lea.sflag [#allocation16], 1
    %36 = vsyncpa %s35, 0
    loop: start=0, step=1, limit=18
    $region2: #{tpu_custom_call.1} parent=1 // loop_pre_header
      _
    $region3: #{tpu_custom_call.1} parent=1 // loop_header
      %s38 = sphi 0, %s42
      %p39 = scmp.ge.s32.totalorder %s38, 18
      %s45 = sphi 0, %s57
      %s46 = sphi 0, %s53
      %s47 = sphi 0, %s45
      %s48 = sphi 0, %s46
      %s49 = sphi 0, %s47
      %s50 = sphi 0, %s48
      %s78 = sphi 0, %s80
      %s81 = sphi 0, %s78
      %s82 = sphi 0, %s81
      %s98 = sphi 0, %s82
      %s122 = sphi 0, %s124
      %s125 = sphi 0, %s122
      %s126 = sphi 0, %s125
      %s142 = sphi 0, %s126
      %s148 = sphi 0, %s150
      %s151 = sphi 0, %s148
      %s152 = sphi 0, %s151
      %s168 = sphi 0, %s152
      %s174 = sphi 0, %s176
      %s177 = sphi 0, %s174
      %s178 = sphi 0, %s177
      %s194 = sphi 0, %s178
      %s200 = sphi 0, %s202
      %s203 = sphi 0, %s200
      %s204 = sphi 0, %s203
      %s220 = sphi 0, %s204
      %s226 = sphi 0, %s228
      %s229 = sphi 0, %s226
      %s230 = sphi 0, %s229
      %s246 = sphi 0, %s230
    $region4: #{tpu_custom_call.1} parent=1 // loop_header_branch
      %41 = sbr.rel (%p39) target = $region8
    $region5: #{tpu_custom_call.1} parent=1 // loop_body
      %s43 = ssub.s32 %s38, 1
      %s44 = ssub.s32 %s38, 2
      %s51 = sadd.s32 1, %s46
      %p52 = scmp.ge.s32.totalorder %s51, 8
      %s53 = scalar_select %p52, 0, %s51
      %s54 = sadd.s32 1, %s45
      %s55 = scalar_select %p52, %s54, %s45
      %p56 = scmp.ge.s32.totalorder %s55, 2
      %s57 = scalar_select %p56, 0, %s55
      %s58 = sshra.s32 %s46, 7
      %s59 = sand.u32 %s46, 127
      %s60 = sadd.s32 %s58, %s45
      %s61 = smul.u32 %s60, 128
      %s62 = sshra.s32 %s46, 7
      %s63 = sand.u32 %s46, 127
      %s64 = sadd.s32 %s61, %s63
      %s65 = sld [smem:[#allocation5 + %s64]]
      %s66 = sshra.s32 %s53, 7
      %s67 = sand.u32 %s53, 127
      %s68 = sadd.s32 %s66, %s57
      %s69 = smul.u32 %s68, 128
      %s70 = sshra.s32 %s53, 7
      %s71 = sand.u32 %s53, 127
      %s72 = sadd.s32 %s69, %s71
      %s73 = sld [smem:[#allocation5 + %s72]]
      %s74 = ssub.s32 %s45, %s57
      %s75 = ssub.s32 %s65, %s73
      %s76 = sor.u32 %s74, %s75
      %p77 = scmp.eq.s32.totalorder %s76, 0
      %s79 = sadd.s32 %s78, 1
      %s80 = scalar_select %p77, %s78, %s79
      %p83 = pneg %p77
      %p84 = scmp.eq.s32.totalorder %s38, 15
      %p85 = por %p83, %p84
      %p86 = scmp.ne.s32.totalorder %s78, %s81
      %p87 = scmp.eq.s32.totalorder %s38, 0
      %p88 = por %p86, %p87
      %p89 = scmp.ne.s32.totalorder %s78, %s81
      %p90 = scmp.eq.s32.totalorder %s43, 15
      %p91 = por %p89, %p90
      %p92 = scmp.ne.s32.totalorder %s81, %s82
      %p93 = scmp.eq.s32.totalorder %s43, 0
      %p94 = por %p92, %p93
      %p95 = scmp.ne.s32.totalorder %s81, %s82
      %p96 = scmp.eq.s32.totalorder %s44, 15
      %p97 = por %p95, %p96
      %p99 = scmp.ne.s32.totalorder %s82, %s98
      %p100 = scmp.eq.s32.totalorder %s44, 0
      %p101 = por %p99, %p100
      %s102 = sshra.s32 %s46, 7
      %s103 = sand.u32 %s46, 127
      %s104 = sadd.s32 %s102, %s45
      %s105 = smul.u32 %s104, 128
      %s106 = sshra.s32 %s46, 7
      %s107 = sand.u32 %s46, 127
      %s108 = sadd.s32 %s105, %s107
      %s109 = sld [smem:[#allocation6 + %s108]]
      %s110 = sshra.s32 %s53, 7
      %s111 = sand.u32 %s53, 127
      %s112 = sadd.s32 %s110, %s57
      %s113 = smul.u32 %s112, 128
      %s114 = sshra.s32 %s53, 7
      %s115 = sand.u32 %s53, 127
      %s116 = sadd.s32 %s113, %s115
      %s117 = sld [smem:[#allocation6 + %s116]]
      %s118 = ssub.s32 %s45, %s57
      %s119 = ssub.s32 %s109, %s117
      %s120 = sor.u32 %s118, %s119
      %p121 = scmp.eq.s32.totalorder %s120, 0
      %s123 = sadd.s32 %s122, 1
      %s124 = scalar_select %p121, %s122, %s123
      %p127 = pneg %p121
      %p128 = scmp.eq.s32.totalorder %s38, 15
      %p129 = por %p127, %p128
      %p130 = scmp.ne.s32.totalorder %s122, %s125
      %p131 = scmp.eq.s32.totalorder %s38, 0
      %p132 = por %p130, %p131
      %p133 = scmp.ne.s32.totalorder %s122, %s125
      %p134 = scmp.eq.s32.totalorder %s43, 15
      %p135 = por %p133, %p134
      %p136 = scmp.ne.s32.totalorder %s125, %s126
      %p137 = scmp.eq.s32.totalorder %s43, 0
      %p138 = por %p136, %p137
      %p139 = scmp.ne.s32.totalorder %s125, %s126
      %p140 = scmp.eq.s32.totalorder %s44, 15
      %p141 = por %p139, %p140
      %p143 = scmp.ne.s32.totalorder %s126, %s142
      %p144 = scmp.eq.s32.totalorder %s44, 0
      %p145 = por %p143, %p144
      %s146 = ssub.s32 %s45, %s57
      %p147 = scmp.eq.s32.totalorder %s146, 0
      %s149 = sadd.s32 %s148, 1
      %s150 = scalar_select %p147, %s148, %s149
      %p153 = pneg %p147
      %p154 = scmp.eq.s32.totalorder %s38, 15
      %p155 = por %p153, %p154
      %p156 = scmp.ne.s32.totalorder %s148, %s151
      %p157 = scmp.eq.s32.totalorder %s38, 0
      %p158 = por %p156, %p157
      %p159 = scmp.ne.s32.totalorder %s148, %s151
      %p160 = scmp.eq.s32.totalorder %s43, 15
      %p161 = por %p159, %p160
      %p162 = scmp.ne.s32.totalorder %s151, %s152
      %p163 = scmp.eq.s32.totalorder %s43, 0
      %p164 = por %p162, %p163
      %p165 = scmp.ne.s32.totalorder %s151, %s152
      %p166 = scmp.eq.s32.totalorder %s44, 15
      %p167 = por %p165, %p166
      %p169 = scmp.ne.s32.totalorder %s152, %s168
      %p170 = scmp.eq.s32.totalorder %s44, 0
      %p171 = por %p169, %p170
      %s172 = ssub.s32 %s45, %s57
      %p173 = scmp.eq.s32.totalorder %s172, 0
      %s175 = sadd.s32 %s174, 1
      %s176 = scalar_select %p173, %s174, %s175
      %p179 = pneg %p173
      %p180 = scmp.eq.s32.totalorder %s38, 15
      %p181 = por %p179, %p180
      %p182 = scmp.ne.s32.totalorder %s174, %s177
      %p183 = scmp.eq.s32.totalorder %s38, 0
      %p184 = por %p182, %p183
      %p185 = scmp.ne.s32.totalorder %s174, %s177
      %p186 = scmp.eq.s32.totalorder %s43, 15
      %p187 = por %p185, %p186
      %p188 = scmp.ne.s32.totalorder %s177, %s178
      %p189 = scmp.eq.s32.totalorder %s43, 0
      %p190 = por %p188, %p189
      %p191 = scmp.ne.s32.totalorder %s177, %s178
      %p192 = scmp.eq.s32.totalorder %s44, 15
      %p193 = por %p191, %p192
      %p195 = scmp.ne.s32.totalorder %s178, %s194
      %p196 = scmp.eq.s32.totalorder %s44, 0
      %p197 = por %p195, %p196
      %s198 = ssub.s32 %s45, %s57
      %p199 = scmp.eq.s32.totalorder %s198, 0
      %s201 = sadd.s32 %s200, 1
      %s202 = scalar_select %p199, %s200, %s201
      %p205 = pneg %p199
      %p206 = scmp.eq.s32.totalorder %s38, 15
      %p207 = por %p205, %p206
      %p208 = scmp.ne.s32.totalorder %s200, %s203
      %p209 = scmp.eq.s32.totalorder %s38, 0
      %p210 = por %p208, %p209
      %p211 = scmp.ne.s32.totalorder %s200, %s203
      %p212 = scmp.eq.s32.totalorder %s43, 15
      %p213 = por %p211, %p212
      %p214 = scmp.ne.s32.totalorder %s203, %s204
      %p215 = scmp.eq.s32.totalorder %s43, 0
      %p216 = por %p214, %p215
      %p217 = scmp.ne.s32.totalorder %s203, %s204
      %p218 = scmp.eq.s32.totalorder %s44, 15
      %p219 = por %p217, %p218
      %p221 = scmp.ne.s32.totalorder %s204, %s220
      %p222 = scmp.eq.s32.totalorder %s44, 0
      %p223 = por %p221, %p222
      %s224 = ssub.s32 %s45, %s57
      %p225 = scmp.eq.s32.totalorder %s224, 0
      %s227 = sadd.s32 %s226, 1
      %s228 = scalar_select %p225, %s226, %s227
      %p231 = pneg %p225
      %p232 = scmp.eq.s32.totalorder %s38, 15
      %p233 = por %p231, %p232
      %p234 = scmp.ne.s32.totalorder %s226, %s229
      %p235 = scmp.eq.s32.totalorder %s38, 0
      %p236 = por %p234, %p235
      %p237 = scmp.ne.s32.totalorder %s226, %s229
      %p238 = scmp.eq.s32.totalorder %s43, 15
      %p239 = por %p237, %p238
      %p240 = scmp.ne.s32.totalorder %s229, %s230
      %p241 = scmp.eq.s32.totalorder %s43, 0
      %p242 = por %p240, %p241
      %p243 = scmp.ne.s32.totalorder %s229, %s230
      %p244 = scmp.eq.s32.totalorder %s44, 15
      %p245 = por %p243, %p244
      %p247 = scmp.ne.s32.totalorder %s230, %s246
      %p248 = scmp.eq.s32.totalorder %s44, 0
      %p249 = por %p247, %p248
      %p250 = scmp.le.s32.totalorder 1, %s38
      %p251 = scmp.lt.s32.totalorder %s38, 17
      %p252 = pnand %p250, %p251
      %p253 = pneg %p252
      // Predicated region
      $region9: #{tpu_custom_call.1} parent=5 // pred_check
        _
      $region10: #{tpu_custom_call.1} parent=5 // pred_check_branch
        %255 = sbr.rel (%p252) target = $region12
      $region11: #{tpu_custom_call.1} parent=5 // pred_region
        %s256 = ssub.s32 %s38, 1
      $region12: #{tpu_custom_call.1} parent=5 // pred_fallthru
        _
      %p257 = scmp.lt.s32.totalorder %s38, 16
      // Predicated region
      $region13: #{tpu_custom_call.1} parent=5 // pred_check
        %p258 = pneg %p257
      $region14: #{tpu_custom_call.1} parent=5 // pred_check_branch
        %260 = sbr.rel (%p258) target = $region16
      $region15: #{tpu_custom_call.1} parent=5 // pred_region
        // Predicated region
        $region17: #{tpu_custom_call.1} parent=15 // pred_check
          %p261 = pneg %p88
        $region18: #{tpu_custom_call.1} parent=15 // pred_check_branch
          %263 = sbr.rel (%p261) target = $region20
        $region19: #{tpu_custom_call.1} parent=15 // pred_region
          %s264 = sand.u32 %s78, 1
          %s265 = scalar_lea.sflag [#allocation10], %s264
          %s266 = sand.u32 %s78, 1
          %s267 = smul.addr %s266, 2
          %s268 = scalar_lea.vmem [#allocation9], %s267
          %s269 = sshra.s32 %s46, 7
          %s270 = sand.u32 %s46, 127
          %s271 = sadd.s32 %s269, %s45
          %s272 = smul.u32 %s271, 128
          %s273 = sshra.s32 %s46, 7
          %s274 = sand.u32 %s46, 127
          %s275 = sadd.s32 %s272, %s274
          %s276 = sld [smem:[#allocation5 + %s275]]
          %s278 = ssub.s32 32, 32
          %279 = vsyncadd %s265, %s278
          %s280 = smul.addr %s45, 3
          %s281 = sadd.s32 %s276, %s280
          %s282 = smul.addr %s281, 32
          %s283 = scalar_lea.hbm %s4, %s282
          %s285 = sshll.u32 %s268, 4
          %s286 = int_to_ptr.vmem [resolvable:$true] %s285
          %288 = dma.hbm_to_vmem [thread:$0]  %s283, 32, %s286, %s265
        $region20: #{tpu_custom_call.1} parent=15 // pred_fallthru
          _
        // Predicated region
        $region21: #{tpu_custom_call.1} parent=15 // pred_check
          %p289 = pneg %p132
        $region22: #{tpu_custom_call.1} parent=15 // pred_check_branch
          %291 = sbr.rel (%p289) target = $region24
        $region23: #{tpu_custom_call.1} parent=15 // pred_region
          %s292 = sand.u32 %s122, 1
          %s293 = scalar_lea.sflag [#allocation13], %s292
          %s294 = sand.u32 %s122, 1
          %s295 = smul.addr %s294, 2
          %s296 = scalar_lea.vmem [#allocation12], %s295
          %s297 = sshra.s32 %s46, 7
          %s298 = sand.u32 %s46, 127
          %s299 = sadd.s32 %s297, %s45
          %s300 = smul.u32 %s299, 128
          %s301 = sshra.s32 %s46, 7
          %s302 = sand.u32 %s46, 127
          %s303 = sadd.s32 %s300, %s302
          %s304 = sld [smem:[#allocation6 + %s303]]
          %s306 = ssub.s32 32, 32
          %307 = vsyncadd %s293, %s306
          %s308 = smul.addr %s45, 3
          %s309 = sadd.s32 %s304, %s308
          %s310 = smul.addr %s309, 32
          %s311 = scalar_lea.hbm %s5, %s310
          %s313 = sshll.u32 %s296, 4
          %s314 = int_to_ptr.vmem [resolvable:$true] %s313
          %316 = dma.hbm_to_vmem [thread:$0]  %s311, 32, %s314, %s293
        $region24: #{tpu_custom_call.1} parent=15 // pred_fallthru
          _
        // Predicated region
        $region25: #{tpu_custom_call.1} parent=15 // pred_check
          %p317 = pneg %p158
        $region26: #{tpu_custom_call.1} parent=15 // pred_check_branch
          %319 = sbr.rel (%p317) target = $region28
        $region27: #{tpu_custom_call.1} parent=15 // pred_region
          %p320 = scmp.lt.s32.totalorder %s45, 1
          %s321 = scalar_select %p320, %s45, 1
          %s322 = smul.addr %s321, 4
          %s323 = scalar_lea.vmem %s6, %s322
        $region28: #{tpu_custom_call.1} parent=15 // pred_fallthru
          _
        // Predicated region
        $region29: #{tpu_custom_call.1} parent=15 // pred_check
          %p324 = pneg %p184
        $region30: #{tpu_custom_call.1} parent=15 // pred_check_branch
          %326 = sbr.rel (%p324) target = $region32
        $region31: #{tpu_custom_call.1} parent=15 // pred_region
          %p327 = scmp.lt.s32.totalorder %s45, 1
          %s328 = scalar_select %p327, %s45, 1
          %s329 = smul.addr %s328, 2
          %s330 = scalar_lea.vmem %s7, %s329
        $region32: #{tpu_custom_call.1} parent=15 // pred_fallthru
          _
      $region16: #{tpu_custom_call.1} parent=5 // pred_fallthru
        _
      %p331 = scmp.le.s32.totalorder 1, %s38
      %p332 = scmp.lt.s32.totalorder %s38, 17
      %p333 = pnand %p331, %p332
      %p334 = pneg %p333
      // Predicated region
      $region33: #{tpu_custom_call.1} parent=5 // pred_check
        _
      $region34: #{tpu_custom_call.1} parent=5 // pred_check_branch
        %336 = sbr.rel (%p333) target = $region36
      $region35: #{tpu_custom_call.1} parent=5 // pred_region
        %s337 = ssub.s32 %s38, 1
        %s338 = sand.u32 %s81, 1
        %s339 = scalar_lea.sflag [#allocation10], %s338
        %s340 = sand.u32 %s81, 1
        %s341 = smul.addr %s340, 2
        %s342 = scalar_lea.vmem [#allocation9], %s341
        // Predicated region
        $region37: #{tpu_custom_call.1} parent=35 // pred_check
          %p343 = pneg %p94
        $region38: #{tpu_custom_call.1} parent=35 // pred_check_branch
          %345 = sbr.rel (%p343) target = $region40
        $region39: #{tpu_custom_call.1} parent=35 // pred_region
          %346 = dma.done %s339, 32
        $region40: #{tpu_custom_call.1} parent=35 // pred_fallthru
          _
        %s347 = sand.u32 %s125, 1
        %s348 = scalar_lea.sflag [#allocation13], %s347
        %s349 = sand.u32 %s125, 1
        %s350 = smul.addr %s349, 2
        %s351 = scalar_lea.vmem [#allocation12], %s350
        // Predicated region
        $region41: #{tpu_custom_call.1} parent=35 // pred_check
          %p352 = pneg %p138
        $region42: #{tpu_custom_call.1} parent=35 // pred_check_branch
          %354 = sbr.rel (%p352) target = $region44
        $region43: #{tpu_custom_call.1} parent=35 // pred_region
          %355 = dma.done %s348, 32
        $region44: #{tpu_custom_call.1} parent=35 // pred_fallthru
          _
        %s356 = sand.u32 %s81, 1
        %s357 = scalar_lea.sflag [#allocation10], %s356
        %s358 = sand.u32 %s81, 1
        %s359 = smul.addr %s358, 2
        %s360 = scalar_lea.vmem [#allocation9], %s359
        %p361 = pneg %p94
        %p362 = pneg %p91
        %s363 = sand.u32 %s125, 1
        %s364 = scalar_lea.sflag [#allocation13], %s363
        %s365 = sand.u32 %s125, 1
        %s366 = smul.addr %s365, 2
        %s367 = scalar_lea.vmem [#allocation12], %s366
        %p368 = pneg %p138
        %p369 = pneg %p135
        %p370 = scmp.lt.s32.totalorder %s47, 1
        %s371 = scalar_select %p370, %s47, 1
        %s372 = smul.addr %s371, 4
        %s373 = scalar_lea.vmem %s6, %s372
        %p374 = pneg %p164
        %p375 = pneg %p161
        %p376 = scmp.lt.s32.totalorder %s47, 1
        %s377 = scalar_select %p376, %s47, 1
        %s378 = smul.addr %s377, 2
        %s379 = scalar_lea.vmem %s7, %s378
        %p380 = pneg %p190
        %p381 = pneg %p187
        %p382 = pneg %p216
        %p383 = pneg %p213
        %s384 = sand.u32 %s203, 1
        %s385 = scalar_lea.sflag [#allocation11], %s384
        %s386 = sand.u32 %s203, 1
        %s387 = scalar_lea.vmem [#allocation14], %s386
        %p388 = pneg %p242
        %p389 = pneg %p239
        %s390 = sand.u32 %s229, 1
        %s391 = scalar_lea.sflag [#allocation16], %s390
        %s392 = sand.u32 %s229, 1
        %s393 = scalar_lea.vmem [#allocation15], %s392
        %s394 = sshra.s32 %s48, 7
        %s395 = sand.u32 %s48, 127
        %s396 = sadd.s32 %s394, %s47
        %s397 = smul.u32 %s396, 128
        %s398 = sshra.s32 %s48, 7
        %s399 = sand.u32 %s48, 127
        %s400 = sadd.s32 %s397, %s399
        %s401 = sld [smem:[#allocation5 + %s400]]
        %s402 = sshra.s32 %s48, 7
        %s403 = sand.u32 %s48, 127
        %s404 = sadd.s32 %s402, %s47
        %s405 = smul.u32 %s404, 128
        %s406 = sshra.s32 %s48, 7
        %s407 = sand.u32 %s48, 127
        %s408 = sadd.s32 %s405, %s407
        %s409 = sld [smem:[#allocation6 + %s408]]
        %p410 = scmp.lt.s32.totalorder %s47, 1
        %s411 = scalar_select %p410, %s47, 1
        %s412 = smul.addr %s411, 4
        %s413 = scalar_lea.vmem %s6, %s412
        %p414 = scmp.lt.s32.totalorder %s47, 1
        %s415 = scalar_select %p414, %s47, 1
        %s416 = smul.addr %s415, 2
        %s417 = scalar_lea.vmem %s7, %s416
        %p418 = scmp.eq.s32.totalorder %s48, 0
        // Predicated region
        $region45: #{tpu_custom_call.1} parent=35 // pred_check
          %p419 = pneg %p418
        $region46: #{tpu_custom_call.1} parent=35 // pred_check_branch
          %421 = sbr.rel (%p419) target = $region48
        $region47: #{tpu_custom_call.1} parent=35 // pred_region
          %422 = vst [vmem:[#allocation2] sm:$0x3] 0.0
          %423 = vst [vmem:[#allocation3] sm:$0x3] 0.0
        $region48: #{tpu_custom_call.1} parent=35 // pred_fallthru
          _
        %v424 = vlaneseq
        %v425 = vand.u32 %v424, 127
        %v426 = vld [vmem:[%s342] sm:$0x3]
        %v427 = vld [vmem:[%s351] sm:$0x3]
        %s428 = sshra.s32 %s48, 7
        %s429 = sand.u32 %s48, 127
        %s430 = sadd.s32 %s428, %s47
        %s431 = smul.u32 %s430, 128
        %s432 = sshra.s32 %s48, 7
        %s433 = sand.u32 %s48, 127
        %s434 = sadd.s32 %s431, %s433
        %s435 = sld [smem:[#allocation7 + %s434]]
        %v436 = vstv %s435
        %vm437 = vcmp.eq.s32.totalorder %v425, %v436
        %v438 = vsel %vm437, 1, 0
        %vm439 = vcmp.eq.s32.totalorder %v438, 1
        %v440 = vsel %vm439, %v426, 0.0
        %vm441 = vcmask 1041408
        %v442 = vsel %vm441, %v440, 0.0
        %443 = vadd.xlane.f32.xlu0 %v442
        %v444 = vpop.xlane.xlu0 %443
        %s445 = sld [smem:[#allocation8 + %s434]]
        %v446 = vstv %s445
        %vm447 = vcmp.eq.s32.totalorder %v425, %v446
        %v448 = vsel %vm447, 1, 0
        %vm449 = vcmp.eq.s32.totalorder %v448, 1
        %v450 = vsel %vm449, %v427, 0.0
        %v451 = vsel %vm441, %v450, 0.0
        %452 = vadd.xlane.f32.xlu0 %v451
        %v453 = vpop.xlane.xlu0 %452
        %v454 = vstv %s48
        %vm455 = vcmp.eq.s32.totalorder %v425, %v454
        %v456 = vsel %vm455, 1, 0
        %v457 = vcvt.s32.f32 %v456
        %v458 = vld [vmem:[#allocation2] sm:$0x3]
        %v459 = vmul.f32 %v444, %v457
        %v460 = vadd.f32 %v458, %v459
        %461 = vst [vmem:[#allocation2] sm:$0x3] %v460
        %v462 = vld [vmem:[#allocation3] sm:$0x3]
        %v463 = vmul.f32 %v453, %v457
        %v464 = vadd.f32 %v462, %v463
        %465 = vst [vmem:[#allocation3] sm:$0x3] %v464
        %p466 = scmp.eq.s32.totalorder %s48, 7
        // Predicated region
        $region49: #{tpu_custom_call.1} parent=35 // pred_check
          %p467 = pneg %p466
        $region50: #{tpu_custom_call.1} parent=35 // pred_check_branch
          %469 = sbr.rel (%p467) target = $region52
        $region51: #{tpu_custom_call.1} parent=35 // pred_region
          %v470 = vld [vmem:[%s413] sm:$0xf]
          %v471 = vld [vmem:[#allocation2] sm:$0x3]
          %v472 = vld [vmem:[#allocation3] sm:$0x3]
          %v473 = vadd.f32 %v470, %v471
          %v475 = vrot.slane %v472, 6
          %v477 = vadd.f32 %v470, %v475
          %v479 = vrot.slane %v473, 6
          %v481 = vsub.f32 %v477, %v479
          %v482 = vsub.f32 0.0, %v481
          %v483 = vrcp.pop %v481
          %v485 = vrot.slane %v483, 7
          %v487 = vmul.f32 %v482, %v485
          %vm488 = vcmp.lt.f32.partialorder %v487, 0.0
          %v489 = vsel %vm488, -1.0, 1.0
          %v490 = vand.u32 2147483647, %v487
          %vm491 = vcmp.gt.f32.partialorder %v490, 2.4142137
          %vm492 = vmxor %vm491, 1
          %vm493 = vcmp.gt.f32.partialorder %v490, 0.41421357
          %vm494 = vmand %vm492, %vm493
          %vm495 = vcmp.eq.f32.partialorder %v490, 0.0
          %v496 = vsel %vm495, 1.0, %v490
          %v497 = vrcp.pop %v496
          %v498 = vsub.f32 0.0, %v497
          %v499 = vsub.f32 %v490, 1.0
          %v500 = vadd.f32 %v490, 1.0
          %v501 = vrcp.pop %v500
          %v502 = vmul.f32 %v499, %v501
          %v503 = vsel %vm494, %v502, %v490
          %v504 = vsel %vm491, %v498, %v503
          %v505 = vsel %vm494, 0.7853982, 0.0
          %v506 = vsel %vm491, 1.5707964, %v505
          %v507 = vmul.f32 %v504, %v504
          %v508 = vmul.f32 %v507, 0.080537446
          %v509 = vsub.f32 %v508, 0.13877685
          %v510 = vmul.f32 %v509, %v507
          %v511 = vadd.f32 %v510, 0.19977711
          %v512 = vmul.f32 %v511, %v507
          %v513 = vsub.f32 %v512, 0.3333295
          %v514 = vmul.f32 %v513, %v507
          %v515 = vmul.f32 %v514, %v504
          %v516 = vadd.f32 %v506, %v515
          %v517 = vadd.f32 %v516, %v504
          %v518 = vmul.f32 %v489, %v517
          %v519 = vld [vmem:[%s417] sm:$0x3]
          %v521 = vrot.slane %v519, 6
          %v523 = vmul.f32 %v518, %v521
          %v524 = vrot.slane %v519, 1
          %v526 = vmul.f32 %v519, %v524
          %v528 = vrot.slane %v526, 5
          %v530 = vsub.f32 %v523, %v528
          %v531 = vand.u32 2147483647, %v530
          %vm532 = vcmp.lt.f32.partialorder %v531, 1.0
          %v533 = vmul.f32 %v531, 0.5
          %v534 = vmul.f32 %v533, %v531
          %v535 = vsub.f32 %v531, 0.5
          %v536 = vsel %vm532, %v534, %v535
          %vm537 = vcmp.lt.s32.totalorder %v425, 8
          %v538 = vsel %vm537, %v536, 0.0
          %v540 = vrot.slane %v538, 3
          %vm542 = vcmask 1040384
          %v543 = vsel %vm542, %v540, 0.0
          %544 = vadd.xlane.f32.xlu0 %v543
          %v545 = vpop.xlane.xlu0 %544
          %v546 = vrot.slane %v545, 4
          %v547 = vadd.f32 %v545, %v546
          %v548 = vrot.slane %v547, 2
          %v549 = vadd.f32 %v547, %v548
          %v550 = vrot.slane %v549, 1
          %v551 = vadd.f32 %v549, %v550
          %s552 = vtos %v551
          %v553 = vstv %s552
          %554 = vst [vmem:[%s387] sm:$0x1] %v553
          %v555 = vsel %vm542, %v524, 0.0
          %556 = vadd.xlane.f32.xlu0 %v555
          %v557 = vpop.xlane.xlu0 %556
          %v558 = vrot.slane %v557, 4
          %v559 = vadd.f32 %v557, %v558
          %v560 = vrot.slane %v559, 2
          %v561 = vadd.f32 %v559, %v560
          %v562 = vrot.slane %v561, 1
          %v563 = vadd.f32 %v561, %v562
          %s564 = vtos %v563
          %v565 = vstv %s564
          %566 = vst [vmem:[%s393] sm:$0x1] %v565
        $region52: #{tpu_custom_call.1} parent=35 // pred_fallthru
          _
        %s567 = sand.u32 %s203, 1
        %s568 = scalar_lea.sflag [#allocation11], %s567
        %s569 = sand.u32 %s203, 1
        %s570 = scalar_lea.vmem [#allocation14], %s569
        %s571 = sand.u32 %s229, 1
        %s572 = scalar_lea.sflag [#allocation16], %s571
        %s573 = sand.u32 %s229, 1
        %s574 = scalar_lea.vmem [#allocation15], %s573
        // Predicated region
        $region53: #{tpu_custom_call.1} parent=35 // pred_check
          %p575 = pneg %p213
        $region54: #{tpu_custom_call.1} parent=35 // pred_check_branch
          %577 = sbr.rel (%p575) target = $region56
        $region55: #{tpu_custom_call.1} parent=35 // pred_region
          %s579 = ssub.s32 16, 16
          %580 = vsyncadd %s568, %s579
          %s581 = smul.addr %s47, 16
          %s582 = scalar_lea.hbm %s8, %s581
          %s584 = sshll.u32 %s570, 4
          %s585 = int_to_ptr.vmem [resolvable:$true] %s584
          %587 = dma.vmem_to_hbm [thread:$0]  %s585, 16, %s582, %s568
        $region56: #{tpu_custom_call.1} parent=35 // pred_fallthru
          _
        // Predicated region
        $region57: #{tpu_custom_call.1} parent=35 // pred_check
          %p588 = pneg %p239
        $region58: #{tpu_custom_call.1} parent=35 // pred_check_branch
          %590 = sbr.rel (%p588) target = $region60
        $region59: #{tpu_custom_call.1} parent=35 // pred_region
          %s592 = ssub.s32 16, 16
          %593 = vsyncadd %s572, %s592
          %s594 = smul.addr %s47, 16
          %s595 = scalar_lea.hbm %s9, %s594
          %s597 = sshll.u32 %s574, 4
          %s598 = int_to_ptr.vmem [resolvable:$true] %s597
          %600 = dma.vmem_to_hbm [thread:$0]  %s598, 16, %s595, %s572
        $region60: #{tpu_custom_call.1} parent=35 // pred_fallthru
          _
      $region36: #{tpu_custom_call.1} parent=5 // pred_fallthru
        _
      %p601 = scmp.le.s32.totalorder 2, %s38
      // Predicated region
      $region61: #{tpu_custom_call.1} parent=5 // pred_check
        %p602 = pneg %p601
      $region62: #{tpu_custom_call.1} parent=5 // pred_check_branch
        %604 = sbr.rel (%p602) target = $region64
      $region63: #{tpu_custom_call.1} parent=5 // pred_region
        %s605 = ssub.s32 %s38, 2
        // Predicated region
        $region65: #{tpu_custom_call.1} parent=63 // pred_check
          %p606 = pneg %p219
        $region66: #{tpu_custom_call.1} parent=63 // pred_check_branch
          %608 = sbr.rel (%p606) target = $region68
        $region67: #{tpu_custom_call.1} parent=63 // pred_region
          %s609 = sand.u32 %s204, 1
          %s610 = scalar_lea.sflag [#allocation11], %s609
          %s611 = sand.u32 %s204, 1
          %s612 = scalar_lea.vmem [#allocation14], %s611
          %613 = dma.done %s610, 16
        $region68: #{tpu_custom_call.1} parent=63 // pred_fallthru
          _
        // Predicated region
        $region69: #{tpu_custom_call.1} parent=63 // pred_check
          %p614 = pneg %p245
        $region70: #{tpu_custom_call.1} parent=63 // pred_check_branch
          %616 = sbr.rel (%p614) target = $region72
        $region71: #{tpu_custom_call.1} parent=63 // pred_region
          %s617 = sand.u32 %s230, 1
          %s618 = scalar_lea.sflag [#allocation16], %s617
          %s619 = sand.u32 %s230, 1
          %s620 = scalar_lea.vmem [#allocation15], %s619
          %621 = dma.done %s618, 16
        $region72: #{tpu_custom_call.1} parent=63 // pred_fallthru
          _
      $region64: #{tpu_custom_call.1} parent=5 // pred_fallthru
        _
    $region6: #{tpu_custom_call.1} parent=1 // loop_footer
      %s42 = sadd.s32 1, %s38
    $region7: #{tpu_custom_call.1} parent=1 // loop_footer_branch
      %37 = sbr.rel target = $region3
    $region8: #{tpu_custom_call.1} parent=1 // loop_exit
      _
    %622 = vsyncpa [#allocation10], 1
    %s623 = scalar_lea.sflag [#allocation10], 1
    %624 = vsyncpa %s623, 1
    %625 = vsyncpa [#allocation13], 1
    %s626 = scalar_lea.sflag [#allocation13], 1
    %627 = vsyncpa %s626, 1
    %628 = vsyncpa [#allocation11], 1
    %s629 = scalar_lea.sflag [#allocation11], 1
    %630 = vsyncpa %s629, 1
    %631 = vsyncpa [#allocation16], 1
    %s632 = scalar_lea.sflag [#allocation16], 1
    %633 = vsyncpa %s632, 1

</llo_original>
